<compile_context>
chip_gen: v6e
topology: v6e:2x2x1
jax: 0.10.0
libtpu: 0.0.40
codegen_flags: <defaults>
</compile_context>

<pallas_src>
import jax
import jax.numpy as jnp
from jax.experimental import pallas as pl
from jax.experimental.pallas import tpu as pltpu

LANE = 128
ROW_ALIGN = 16  # sublane-safe for both f32 (8) and bf16 (16) row packing


def _round_up(x, m):
    return ((x + m - 1) // m) * m


def qnet_kernel(x_ref, w1_ref, b1_ref, w2_ref, b2_ref, o_ref):
    # In-kernel f32 -> bf16 cast of the activations (rides VALU slack; avoids a
    # separate wrapper-side cast op + extra HBM traffic for x).
    x = x_ref[...].astype(jnp.bfloat16)
    # fc1: [Bt, S] @ [S, Hp] on the MXU with f32 accumulation.
    h = jnp.dot(x, w1_ref[...], preferred_element_type=jnp.float32)
    # Bias + ReLU in f32 on the VPU (kept in-kernel; free under MXU/DMA slack).
    h = jnp.maximum(h + b1_ref[...], 0.0)
    # fc2: [Bt, Hp] @ [Hp, Ap] on the MXU with f32 accumulation.
    out = jnp.dot(h.astype(w2_ref.dtype), w2_ref[...],
                  preferred_element_type=jnp.float32)
    # Single lane-dense full-block store (Ap is a multiple of 128).
    o_ref[...] = (out + b2_ref[...]).astype(o_ref.dtype)


def prepare_qnet_params(w1, b1, w2, b2):
    """One-time parameter prep (call at init / param update, NOT per forward):
    transpose nn.Linear weights to [in, out], pad lane dims to 128, cast
    weights to bf16 (biases stay f32)."""
    H, S = w1.shape
    A = w2.shape[0]
    Hp = _round_up(H, LANE)
    Ap = _round_up(A, LANE)

    w1_t = jnp.zeros((S, Hp), jnp.bfloat16).at[:, :H].set(
        jnp.transpose(w1).astype(jnp.bfloat16))
    b1_p = jnp.zeros((1, Hp), jnp.float32).at[:, :H].set(
        b1.astype(jnp.float32).reshape(1, H))
    w2_t = jnp.zeros((Hp, Ap), jnp.bfloat16).at[:H, :A].set(
        jnp.transpose(w2).astype(jnp.bfloat16))
    b2_p = jnp.zeros((1, Ap), jnp.float32).at[:, :A].set(
        b2.astype(jnp.float32).reshape(1, A))
    return dict(w1_t=w1_t, b1=b1_p, w2_t=w2_t, b2=b2_p,
                S=S, H=H, A=A, Hp=Hp, Ap=Ap)


def _choose_batch_tile(B, b_tile):
    """Pick a batch tile: multiple of 16, capped at b_tile, and capped at
    ~half the batch when possible so the 'parallel' grid axis has >=2 steps
    (lets v7x's two TensorCores both get work)."""
    B16 = _round_up(B, ROW_ALIGN)
    bt = min(b_tile, B16)
    if B16 >= 2 * ROW_ALIGN:
        half = _round_up((B16 + 1) // 2, ROW_ALIGN)
        bt = min(bt, half)
    bt = _round_up(bt, ROW_ALIGN)
    B_pad = _round_up(B, bt)
    return bt, B_pad


def qnet_forward_prepared(x, params, *, b_tile=2048, out_dtype=jnp.float32):
    """Hot-path forward. x: [B, state_dim] (any float dtype, no wrapper cast).
    Returns [B, A] in `out_dtype` (default f32, matching the PyTorch module).
    Pass out_dtype=jnp.bfloat16 to halve the padded output writeback."""
    B, S = x.shape
    assert S == params["S"], "state_dim mismatch"
    Hp, Ap, A = params["Hp"], params["Ap"], params["A"]

    bt, B_pad = _choose_batch_tile(B, b_tile)

    x_in = x.astype(jnp.float32)
    if B_pad != B:
        x_in = jnp.zeros((B_pad, S), jnp.float32).at[:B].set(x_in)

    out_bytes = jnp.dtype(out_dtype).itemsize
    flops = 2 * B_pad * (S * Hp + Hp * Ap)
    bytes_accessed = (B_pad * S * 4                 # x (f32, cast in-kernel)
                      + S * Hp * 2 + Hp * 4         # w1, b1
                      + Hp * Ap * 2 + Ap * 4        # w2, b2
                      + B_pad * Ap * out_bytes)     # out

    out_padded = pl.pallas_call(
        qnet_kernel,
        out_shape=jax.ShapeDtypeStruct((B_pad, Ap), out_dtype),
        grid=(B_pad // bt,),
        in_specs=[
            pl.BlockSpec((bt, S), lambda i: (i, 0)),    # x tile (pipelined)
            pl.BlockSpec((S, Hp), lambda i: (0, 0)),    # w1_t (resident)
            pl.BlockSpec((1, Hp), lambda i: (0, 0)),    # b1   (resident, VMEM)
            pl.BlockSpec((Hp, Ap), lambda i: (0, 0)),   # w2_t (resident)
            pl.BlockSpec((1, Ap), lambda i: (0, 0)),    # b2   (resident, VMEM)
        ],
        out_specs=pl.BlockSpec((bt, Ap), lambda i: (i, 0)),
        compiler_params=pltpu.CompilerParams(
            dimension_semantics=("parallel",),          # v7x: shard batch over 2 TCs
            vmem_limit_bytes=32 * 1024 * 1024,          # safe on v5e/v6e/v7x at bt<=4096
        ),
        cost_estimate=pl.CostEstimate(
            flops=flops, transcendentals=0, bytes_accessed=bytes_accessed),
    )(x_in, params["w1_t"], params["b1"], params["w2_t"], params["b2"])

    # NOTE: padded rows (>= B) and padded action columns (>= A) contain garbage
    # (ReLU(b1)·w2 + b2); downstream consumers that want to skip this slice
    # should read out_padded[:B, :A]-shaped views themselves and never touch
    # the padding.
    return out_padded[:B, :A]


def qnet_forward(x, w1, b1, w2, b2, *, b_tile=2048, out_dtype=jnp.float32):
    """Convenience wrapper matching PyTorch nn.Linear parameter layout:
    w1: [hidden, state], b1: [hidden], w2: [action, hidden], b2: [action]."""
    params = prepare_qnet_params(w1, b1, w2, b2)
    return qnet_forward_prepared(x, params, b_tile=b_tile, out_dtype=out_dtype)


def init_params(key, state_dim, hidden_dim, action_dim, dtype=jnp.float32):
    """Deterministic init mimicking nn.Linear default (uniform +-1/sqrt(fan_in))."""
    k1, k2, k3, k4 = jax.random.split(key, 4)
    bound1 = 1.0 / jnp.sqrt(state_dim)
    bound2 = 1.0 / jnp.sqrt(hidden_dim)
    w1 = jax.random.uniform(k1, (hidden_dim, state_dim), dtype, -bound1, bound1)
    b1 = jax.random.uniform(k2, (hidden_dim,), dtype, -bound1, bound1)
    w2 = jax.random.uniform(k3, (action_dim, hidden_dim), dtype, -bound2, bound2)
    b2 = jax.random.uniform(k4, (action_dim,), dtype, -bound2, bound2)
    return w1, b1, w2, b2


if __name__ == "__main__":
    state_dim, hidden_dim, action_dim = 4, 32, 2

    key = jax.random.PRNGKey(0)
    kx, kp = jax.random.split(key)
    w1, b1, w2, b2 = init_params(kp, state_dim, hidden_dim, action_dim)

    # Prepare weights once (the per-call hot path does no transpose/pad work).
    params = prepare_qnet_params(w1, b1, w2, b2)

    ok = True
    # Small batch (action-selection path) and a larger, non-aligned batch that
    # exercises the multi-step parallel grid + batch padding.
    for batch in (8, 1000):
        x = jax.random.normal(kx, (batch, state_dim), dtype=jnp.float32)
        out = qnet_forward_prepared(x, params)
        out = jax.block_until_ready(out)

        # Pure-JAX f32 reference; tolerance loosened for bf16 MXU operands.
        ref = jnp.maximum(x @ w1.T + b1, 0.0) @ w2.T + b2
        assert out.shape == (batch, action_dim)
        if not jnp.allclose(out, ref, atol=2e-2, rtol=2e-2):
            ok = False
            print(f"batch={batch}: max abs diff "
                  f"{jnp.max(jnp.abs(out - ref))}")

    assert ok
    print("KERNEL_OK")
</pallas_src>

<mosaic_0001>
module attributes {stable_mosaic.version = 11 : i64} {
  func.func @qnet_kernel(%arg0: i32, %arg1: memref<16x4xf32, #tpu.memory_space<vmem>>, %arg2: memref<4x128xbf16, #tpu.memory_space<vmem>>, %arg3: memref<1x128xf32, #tpu.memory_space<vmem>>, %arg4: memref<128x128xbf16, #tpu.memory_space<vmem>>, %arg5: memref<1x128xf32, #tpu.memory_space<vmem>>, %arg6: memref<16x128xf32, #tpu.memory_space<vmem>>) attributes {dimension_semantics = [#tpu.dimension_semantics<parallel>], iteration_bounds = array<i64: 1>, scalar_prefetch = 0 : i64, scratch_operands = 0 : i64, tpu.core_type = #tpu.core_type<tc>, window_params = [{transform_indices = @transform_0, window_bounds = array<i64: 16, 4>}, {pipeline_mode = #tpu.pipeline_mode<synchronous>, transform_indices = @transform_1, window_bounds = array<i64: 4, 128>}, {pipeline_mode = #tpu.pipeline_mode<synchronous>, transform_indices = @transform_2, window_bounds = array<i64: 1, 128>}, {pipeline_mode = #tpu.pipeline_mode<synchronous>, transform_indices = @transform_3, window_bounds = array<i64: 128, 128>}, {pipeline_mode = #tpu.pipeline_mode<synchronous>, transform_indices = @transform_4, window_bounds = array<i64: 1, 128>}, {transform_indices = @transform_5, window_bounds = array<i64: 16, 128>}]} {
    %c0 = arith.constant 0 : index
    %c0_0 = arith.constant 0 : index
    %0 = vector.load %arg1[%c0, %c0_0] : memref<16x4xf32, #tpu.memory_space<vmem>>, vector<16x4xf32>
    %1 = arith.truncf %0 : vector<16x4xf32> to vector<16x4xbf16>
    %c0_1 = arith.constant 0 : index
    %c0_2 = arith.constant 0 : index
    %2 = vector.load %arg2[%c0_1, %c0_2] : memref<4x128xbf16, #tpu.memory_space<vmem>>, vector<4x128xbf16>
    %cst = arith.constant dense<0.000000e+00> : vector<16x128xf32>
    %3 = tpu.matmul %1, %2, %cst {dimension_numbers = #tpu.dot_dimension_numbers<[1], [0], [0], [1], [0, 0, 1, 1], [], []>} : vector<16x4xbf16>, vector<4x128xbf16>, vector<16x128xf32> -> vector<16x128xf32>
    %c0_3 = arith.constant 0 : index
    %c0_4 = arith.constant 0 : index
    %4 = vector.load %arg3[%c0_3, %c0_4] : memref<1x128xf32, #tpu.memory_space<vmem>>, vector<1x128xf32>
    %5 = vector.broadcast %4 : vector<1x128xf32> to vector<16x128xf32>
    %6 = arith.addf %3, %5 : vector<16x128xf32>
    %cst_5 = arith.constant 0.000000e+00 : f32
    %7 = vector.broadcast %cst_5 : f32 to vector<16x128xf32>
    %8 = arith.maximumf %6, %7 : vector<16x128xf32>
    %9 = arith.truncf %8 : vector<16x128xf32> to vector<16x128xbf16>
    %c0_6 = arith.constant 0 : index
    %c0_7 = arith.constant 0 : index
    %10 = vector.load %arg4[%c0_6, %c0_7] : memref<128x128xbf16, #tpu.memory_space<vmem>>, vector<128x128xbf16>
    %cst_8 = arith.constant dense<0.000000e+00> : vector<16x128xf32>
    %11 = tpu.matmul %9, %10, %cst_8 {dimension_numbers = #tpu.dot_dimension_numbers<[1], [0], [0], [1], [0, 0, 1, 1], [], []>} : vector<16x128xbf16>, vector<128x128xbf16>, vector<16x128xf32> -> vector<16x128xf32>
    %c0_9 = arith.constant 0 : index
    %c0_10 = arith.constant 0 : index
    %12 = vector.load %arg5[%c0_9, %c0_10] : memref<1x128xf32, #tpu.memory_space<vmem>>, vector<1x128xf32>
    %13 = vector.broadcast %12 : vector<1x128xf32> to vector<16x128xf32>
    %14 = arith.addf %11, %13 : vector<16x128xf32>
    %c0_11 = arith.constant 0 : index
    %c0_12 = arith.constant 0 : index
    %15 = vector.load %arg6[%c0_11, %c0_12] : memref<16x128xf32, #tpu.memory_space<vmem>>, vector<16x128xf32>
    tpu.vector_store %arg6[%c0_11, %c0_12], %14 {strides = array<i32>} : memref<16x128xf32, #tpu.memory_space<vmem>>, vector<16x128xf32>,
    return
  }
  func.func @transform_0(%arg0: i32) -> (i32, i32) {
    %c0_i32 = arith.constant 0 : i32
    %c0_i32_0 = arith.constant 0 : i32
    return %arg0, %c0_i32 : i32, i32
  }
  func.func @transform_1(%arg0: i32) -> (i32, i32) {
    %c0_i32 = arith.constant 0 : i32
    %c0_i32_0 = arith.constant 0 : i32
    %c0_i32_1 = arith.constant 0 : i32
    return %c0_i32, %c0_i32_0 : i32, i32
  }
  func.func @transform_2(%arg0: i32) -> (i32, i32) {
    %c0_i32 = arith.constant 0 : i32
    %c0_i32_0 = arith.constant 0 : i32
    %c0_i32_1 = arith.constant 0 : i32
    return %c0_i32, %c0_i32_0 : i32, i32
  }
  func.func @transform_3(%arg0: i32) -> (i32, i32) {
    %c0_i32 = arith.constant 0 : i32
    %c0_i32_0 = arith.constant 0 : i32
    %c0_i32_1 = arith.constant 0 : i32
    return %c0_i32, %c0_i32_0 : i32, i32
  }
  func.func @transform_4(%arg0: i32) -> (i32, i32) {
    %c0_i32 = arith.constant 0 : i32
    %c0_i32_0 = arith.constant 0 : i32
    %c0_i32_1 = arith.constant 0 : i32
    return %c0_i32, %c0_i32_0 : i32, i32
  }
  func.func @transform_5(%arg0: i32) -> (i32, i32) {
    %c0_i32 = arith.constant 0 : i32
    %c0_i32_0 = arith.constant 0 : i32
    return %arg0, %c0_i32 : i32, i32
  }
}

</mosaic_0001>

<llo_original>
// kernel: tpu_custom_call.1
$region0: #{tpu_custom_call.1}
  #allocation0 [shape = 'u32[]', space=smem, size = 0x4, offset = 0x4, fixed_abs, tag = 'smem constant byte address 0x4 - core index']
  #allocation1 [shape = 'u32[144,128]{1,0:T(1,128)}', space=vmem, size = 0x12000, scoped, tag = 'internal scratch']
  %s0 = inlined_call_operand.vmem [shape: f32[16,4], index: 0, kind: input, shape index: {}]
  %s1 = inlined_call_operand.vmem [shape: bf16[4,128], index: 1, kind: input, shape index: {}]
  %s2 = inlined_call_operand.vmem [shape: f32[1,128], index: 2, kind: input, shape index: {}]
  %s3 = inlined_call_operand.hbm [shape: bf16[128,128], index: 3, kind: input, shape index: {}]
  %s4 = inlined_call_operand.vmem [shape: f32[1,128], index: 4, kind: input, shape index: {}]
  %s5 = inlined_call_operand.hbm [shape: f32[16,128], index: 5, kind: output, shape index: {}]
  %s6 = sld [smem:[#allocation0]]
  $region34: #{tpu_custom_call.1} parent=0
    _
  %s8 = ssub.s32 1, %s6
  %s9 = scalar_select 0, %s8, %s6
  $region1: #{tpu_custom_call.1} parent=0
    #allocation2 [shape = 'u8[32768]{0}', space=vmem, size = 0x8000, scoped, tag = 'input window, operand 3, single buffered']
    #allocation3 [shape = 's32[1]{0}', space=sflag, size = 0x4, scoped, tag = 'scoped memory for tpu_custom_call.1']
    #allocation4 [shape = 's32[1]{0}', space=sflag, size = 0x4, scoped, tag = 'scoped memory for tpu_custom_call.1']
    #allocation5 [shape = 'u8[8192]{0}', space=vmem, size = 0x2000, scoped, tag = 'output window, operand 0, single buffered']
    %10 = vsyncpa [#allocation3], 0
    %11 = vsyncpa [#allocation4], 0
    // Predicated region
    $region2: #{tpu_custom_call.1} parent=1 // pred_check
      _
    $region3: #{tpu_custom_call.1} parent=1 // pred_check_branch
      %13 = sbr.rel (0) target = $region5
    $region4: #{tpu_custom_call.1} parent=1 // pred_region
      _
    $region5: #{tpu_custom_call.1} parent=1 // pred_fallthru
      _
    // Predicated region
    $region6: #{tpu_custom_call.1} parent=1 // pred_check
      _
    $region7: #{tpu_custom_call.1} parent=1 // pred_check_branch
      %15 = sbr.rel (0) target = $region9
    $region8: #{tpu_custom_call.1} parent=1 // pred_region
      _
    $region9: #{tpu_custom_call.1} parent=1 // pred_fallthru
      _
    // Predicated region
    $region10: #{tpu_custom_call.1} parent=1 // pred_check
      _
    $region11: #{tpu_custom_call.1} parent=1 // pred_check_branch
      %17 = sbr.rel (0) target = $region13
    $region12: #{tpu_custom_call.1} parent=1 // pred_region
      _
    $region13: #{tpu_custom_call.1} parent=1 // pred_fallthru
      _
    // Predicated region
    $region14: #{tpu_custom_call.1} parent=1 // pred_check
      _
    $region15: #{tpu_custom_call.1} parent=1 // pred_check_branch
      %19 = sbr.rel (0) target = $region17
    $region16: #{tpu_custom_call.1} parent=1 // pred_region
      %s21 = ssub.s32 1024, 1024
      %22 = vsyncadd [#allocation3], %s21
      %s23 = sshll.u32 [#allocation2], 4
      %s24 = int_to_ptr.vmem [resolvable:$true] %s23
      %29 = dma.hbm_to_vmem [thread:$0]  %s3, 1024, %s24, [#allocation3], 64, 64, 4
    $region17: #{tpu_custom_call.1} parent=1 // pred_fallthru
      _
    // Predicated region
    $region18: #{tpu_custom_call.1} parent=1 // pred_check
      _
    $region19: #{tpu_custom_call.1} parent=1 // pred_check_branch
      %31 = sbr.rel (0) target = $region21
    $region20: #{tpu_custom_call.1} parent=1 // pred_region
      _
    $region21: #{tpu_custom_call.1} parent=1 // pred_fallthru
      _
    // Predicated region
    $region22: #{tpu_custom_call.1} parent=1 // pred_check
      _
    $region23: #{tpu_custom_call.1} parent=1 // pred_check_branch
      %33 = sbr.rel (0) target = $region25
    $region24: #{tpu_custom_call.1} parent=1 // pred_region
      %34 = dma.done [#allocation3], 1024
    $region25: #{tpu_custom_call.1} parent=1 // pred_fallthru
      _
    %v36 = vld [vmem:[%s0] sm:$0xff]
    %v37 = vld [vmem:[%s0 + $0x8] sm:$0xff]
    %v38 = vpack.c.bf16 %v37, %v36
    %v39 = vld [vmem:[%s1] sm:$0x3]
    %v40 = vld [vmem:[%s2] sm:$0x1]
    %v42 = vlaneseq
    %v43 = vshrl.u32 %v42, 7
    %v44 = vsub.s32 0, %v43
    %v45 = vrot.slane %v40, %v44
    %vm47 = vcmask 31744
    %v49 = vsel %vm47, %v38, 0
    %vm51 = vcmask 1041408
    %v53 = vsel %vm51, %v39, 0
    %55 = vmatprep.subr.bf16.mxu0 0
    %56 = vmatpush1.bf16.msra.mxu0 0
    %57 = vmatprep.subr.bf16.mxu0 0
    %58 = vmatpush1.bf16.msra.mxu0 0
    %59 = vmatprep.subr.bf16.mxu0 0
    %60 = vmatpush1.bf16.msra.mxu0 0
    %61 = vmatprep.subr.bf16.mxu0 0
    %62 = vmatpush1.bf16.msra.mxu0 0
    %63 = vmatprep.subr.bf16.mxu0 0
    %64 = vmatpush1.bf16.msra.mxu0 0
    %65 = vmatprep.subr.bf16.mxu0 0
    %66 = vmatpush1.bf16.msra.mxu0 0
    %67 = vmatprep.subr.bf16.mxu0 0
    %68 = vmatpush1.bf16.msra.mxu0 0
    %69 = vmatprep.subr.bf16.mxu0 0
    %70 = vmatpush1.bf16.msra.mxu0 %v53
    %71 = vmatprep.subr.bf16.mxu0 0
    %72 = vmatpush2.bf16.msra.mxu0 0
    %73 = vmatprep.subr.bf16.mxu0 0
    %74 = vmatpush2.bf16.msra.mxu0 0
    %75 = vmatprep.subr.bf16.mxu0 0
    %76 = vmatpush2.bf16.msra.mxu0 0
    %77 = vmatprep.subr.bf16.mxu0 0
    %78 = vmatpush2.bf16.msra.mxu0 0
    %79 = vmatprep.subr.bf16.mxu0 0
    %80 = vmatpush2.bf16.msra.mxu0 0
    %81 = vmatprep.subr.bf16.mxu0 0
    %82 = vmatpush2.bf16.msra.mxu0 0
    %83 = vmatprep.subr.bf16.mxu0 0
    %84 = vmatpush2.bf16.msra.mxu0 0
    %85 = vmatprep.subr.bf16.mxu0 0
    %86 = vmatpush2.bf16.msra.mxu0 0
    %87 = vmatprep.mubr.bf16.mxu0 0
    %88 = vmatmul.mubr.bf16.gmra.mxu0 %v49
    %v89 = vpop.f32.mrf.mxu0
    %v90 = vadd.f32 %v45, %v89
    %v91 = vpop.f32.mrf.mxu0
    %v92 = vpop.f32.mrf.mxu0
    %v93 = vadd.f32 %v45, %v92
    %v94 = vpop.f32.mrf.mxu0
    %95 = vdwg.mxu0
    %v96 = vmax.f32 %v90, 0.0
    %v97 = vmax.f32 %v93, 0.0
    %v98 = vpack.c.bf16 %v97, %v96
    %v99 = vld [vmem:[#allocation2] sm:$0xf]
    %v100 = vld [vmem:[#allocation2 + $0x4] sm:$0xf]
    %v101 = vld [vmem:[#allocation2 + $0x8] sm:$0xf]
    %v102 = vld [vmem:[#allocation2 + $0xc] sm:$0xf]
    %v103 = vld [vmem:[#allocation2 + $0x10] sm:$0xf]
    %v104 = vld [vmem:[#allocation2 + $0x14] sm:$0xf]
    %v105 = vld [vmem:[#allocation2 + $0x18] sm:$0xf]
    %v106 = vld [vmem:[#allocation2 + $0x1c] sm:$0xf]
    %v107 = vld [vmem:[#allocation2 + $0x20] sm:$0xf]
    %v108 = vld [vmem:[#allocation2 + $0x24] sm:$0xf]
    %v109 = vld [vmem:[#allocation2 + $0x28] sm:$0xf]
    %v110 = vld [vmem:[#allocation2 + $0x2c] sm:$0xf]
    %v111 = vld [vmem:[#allocation2 + $0x30] sm:$0xf]
    %v112 = vld [vmem:[#allocation2 + $0x34] sm:$0xf]
    %v113 = vld [vmem:[#allocation2 + $0x38] sm:$0xf]
    %v114 = vld [vmem:[#allocation2 + $0x3c] sm:$0xf]
    %v115 = vld [vmem:[%s4] sm:$0x1]
    %v117 = vlaneseq
    %v118 = vshrl.u32 %v117, 7
    %v119 = vsub.s32 0, %v118
    %v120 = vrot.slane %v115, %v119
    %v138 = vunpack.c.l.b16 %v99
    %v139 = vunpack.c.l.b16 %v100
    %v140 = vunpack.c.l.b16 %v101
    %v141 = vunpack.c.l.b16 %v102
    %v142 = vunpack.c.l.b16 %v103
    %v143 = vunpack.c.l.b16 %v104
    %v144 = vunpack.c.l.b16 %v105
    %v145 = vunpack.c.l.b16 %v106
    %v146 = vunpack.c.l.b16 %v107
    %v147 = vunpack.c.l.b16 %v108
    %v148 = vunpack.c.l.b16 %v109
    %v149 = vunpack.c.l.b16 %v110
    %v150 = vunpack.c.l.b16 %v111
    %v151 = vunpack.c.l.b16 %v112
    %v152 = vunpack.c.l.b16 %v113
    %v153 = vunpack.c.l.b16 %v114
    %v154 = vpack.c.b16 %v139, %v138
    %v155 = vpack.c.b16 %v141, %v140
    %v156 = vpack.c.b16 %v143, %v142
    %v157 = vpack.c.b16 %v145, %v144
    %v158 = vpack.c.b16 %v147, %v146
    %v159 = vpack.c.b16 %v149, %v148
    %v160 = vpack.c.b16 %v151, %v150
    %v161 = vpack.c.b16 %v153, %v152
    %170 = vmatprep.subr.bf16.mxu0 0
    %171 = vmatpush1.bf16.msra.mxu0 %v161
    %172 = vmatprep.subr.bf16.mxu0 0
    %173 = vmatpush1.bf16.msra.mxu0 %v160
    %174 = vmatprep.subr.bf16.mxu0 0
    %175 = vmatpush1.bf16.msra.mxu0 %v159
    %176 = vmatprep.subr.bf16.mxu0 0
    %177 = vmatpush1.bf16.msra.mxu0 %v158
    %178 = vmatprep.subr.bf16.mxu0 0
    %179 = vmatpush1.bf16.msra.mxu0 %v157
    %180 = vmatprep.subr.bf16.mxu0 0
    %181 = vmatpush1.bf16.msra.mxu0 %v156
    %182 = vmatprep.subr.bf16.mxu0 0
    %183 = vmatpush1.bf16.msra.mxu0 %v155
    %184 = vmatprep.subr.bf16.mxu0 0
    %185 = vmatpush1.bf16.msra.mxu0 %v154
    %186 = vmatprep.subr.bf16.mxu0 0
    %187 = vmatpush2.bf16.msra.mxu0 0
    %188 = vmatprep.subr.bf16.mxu0 0
    %189 = vmatpush2.bf16.msra.mxu0 0
    %190 = vmatprep.subr.bf16.mxu0 0
    %191 = vmatpush2.bf16.msra.mxu0 0
    %192 = vmatprep.subr.bf16.mxu0 0
    %193 = vmatpush2.bf16.msra.mxu0 0
    %194 = vmatprep.subr.bf16.mxu0 0
    %195 = vmatpush2.bf16.msra.mxu0 0
    %196 = vmatprep.subr.bf16.mxu0 0
    %197 = vmatpush2.bf16.msra.mxu0 0
    %198 = vmatprep.subr.bf16.mxu0 0
    %199 = vmatpush2.bf16.msra.mxu0 0
    %200 = vmatprep.subr.bf16.mxu0 0
    %201 = vmatpush2.bf16.msra.mxu0 0
    %202 = vmatprep.mubr.bf16.mxu0 0
    %203 = vmatmul.mubr.bf16.gmra.mxu0 %v98
    %v204 = vpop.f32.mrf.mxu0
    %v205 = vadd.f32 %v120, %v204
    %v206 = vpop.f32.mrf.mxu0
    %v207 = vpop.f32.mrf.mxu0
    %v208 = vadd.f32 %v120, %v207
    %v209 = vpop.f32.mrf.mxu0
    %210 = vdwg.mxu0
    %211 = vst [vmem:[#allocation5] sm:$0xff] %v205
    %212 = vst [vmem:[#allocation5 + $0x8] sm:$0xff] %v208
    // Predicated region
    $region26: #{tpu_custom_call.1} parent=1 // pred_check
      _
    $region27: #{tpu_custom_call.1} parent=1 // pred_check_branch
      %214 = sbr.rel (0) target = $region29
    $region28: #{tpu_custom_call.1} parent=1 // pred_region
      %s216 = ssub.s32 256, 256
      %217 = vsyncadd [#allocation4], %s216
      %s218 = sshll.u32 [#allocation5], 4
      %s219 = int_to_ptr.vmem [resolvable:$true] %s218
      %224 = dma.vmem_to_hbm [thread:$0]  %s219, 256, %s5, [#allocation4], 128, 128, 8
    $region29: #{tpu_custom_call.1} parent=1 // pred_fallthru
      _
    // Predicated region
    $region30: #{tpu_custom_call.1} parent=1 // pred_check
      _
    $region31: #{tpu_custom_call.1} parent=1 // pred_check_branch
      %226 = sbr.rel (0) target = $region33
    $region32: #{tpu_custom_call.1} parent=1 // pred_region
      %227 = dma.done [#allocation4], 256
    $region33: #{tpu_custom_call.1} parent=1 // pred_fallthru
      _
    %228 = vsyncpa [#allocation3], 1
    %229 = vsyncpa [#allocation4], 1

</llo_original>
